<compile_context>
chip_gen: v7x
topology: tpu7x:2x2x1
jax: 0.10.0
libtpu: 0.0.40
codegen_flags: <defaults>
</compile_context>

<pallas_src>
import functools

import jax
import jax.numpy as jnp
from jax.experimental import pallas as pl
from jax.experimental.pallas import tpu as pltpu


def _round_up(n, m):
    return ((n + m - 1) // m) * m


def _fused_dnn_kernel(*refs, n_layers: int, dim_out: int, compute_dtype):
    """refs = (x_ref, w0, b0, w1, b1, ..., w{L-1}, b{L-1}, o_ref).

    h = relu(h @ W_i + b_i) for all but the last layer; last layer linear.
    The activation lives entirely in vregs/VMEM across layers; each layer is
    one MXU matmul (bf16 operands, f32 accumulation).
    """
    x_ref = refs[0]
    o_ref = refs[-1]
    h = x_ref[...].astype(jnp.float32)
    for li in range(n_layers):
        w_ref = refs[1 + 2 * li]
        b_ref = refs[2 + 2 * li]
        h = jnp.dot(h.astype(compute_dtype), w_ref[...],
                    preferred_element_type=jnp.float32)
        h = h + b_ref[...]                       # [1, out_pad] broadcasts over rows
        if li != n_layers - 1:
            h = jnp.maximum(h, 0.0)
    # Store only the real output lanes: no separate slice dispatch needed.
    o_ref[...] = h[:, :dim_out].astype(o_ref.dtype)


def fused_dnn_call(x, flat_params, dim_out, out_dtype):
    """Single pallas_call running the entire DNN forward on raw (unpadded) x."""
    n_layers = len(flat_params) // 2
    batch = x.shape[0]
    w_dtype = flat_params[0].dtype
    kernel = functools.partial(
        _fused_dnn_kernel, n_layers=n_layers, dim_out=dim_out, compute_dtype=w_dtype
    )
    vmem_spec = pl.BlockSpec(memory_space=pltpu.MemorySpace.VMEM)

    # Explicit scoped-VMEM budget: all operands + output + headroom.
    total_bytes = x.size * x.dtype.itemsize
    total_bytes += batch * dim_out * jnp.dtype(out_dtype).itemsize
    for p in flat_params:
        total_bytes += p.size * p.dtype.itemsize
    vmem_limit = int(min(64 * 1024 * 1024,
                         max(4 * 1024 * 1024, 2 * total_bytes + (1 << 20))))

    return pl.pallas_call(
        kernel,
        out_shape=jax.ShapeDtypeStruct((batch, dim_out), out_dtype),
        in_specs=[vmem_spec] * (1 + len(flat_params)),
        out_specs=vmem_spec,
        compiler_params=pltpu.CompilerParams(vmem_limit_bytes=vmem_limit),
    )(x, *flat_params)


def init_dnn_params(key, dim_in, dim_out, width, depth, dtype=jnp.float32):
    """Deterministic init mimicking PyTorch nn.Linear defaults (U(-1/sqrt(fan_in), +))."""
    params = []
    dims_in = [dim_in] + [width] * (depth - 1)
    dims_out = [width] * depth
    for li in range(depth):
        key, kw, kb = jax.random.split(key, 3)
        fan_in = dims_in[li]
        bound = 1.0 / jnp.sqrt(fan_in)
        w = jax.random.uniform(kw, (dims_out[li], fan_in), dtype, -bound, bound)
        b = jax.random.uniform(kb, (dims_out[li],), dtype, -bound, bound)
        params.append((w, b))
    key, kw, kb = jax.random.split(key, 3)
    bound = 1.0 / jnp.sqrt(width)
    w = jax.random.uniform(kw, (dim_out, width), dtype, -bound, bound)
    b = jax.random.uniform(kb, (dim_out,), dtype, -bound, bound)
    params.append((w, b))
    return params


def prepare_params(params, dim_in, lane=128, weight_dtype=jnp.bfloat16):
    """Pre-transpose weights to [in, out], zero-pad to lane-dense tiles, cast to bf16.

    Layer 0 keeps its raw contraction dim (= dim_in) so raw x needs no padding;
    subsequent layers' in dims are padded to the previous layer's padded out dim
    (zero rows -> exact results). Biases stay f32 as [1, out_pad] rows.
    """
    prepared = []
    prev_out_pad = dim_in
    for w, b in params:
        out_dim, in_dim = w.shape
        out_pad = _round_up(out_dim, lane)
        in_pad = prev_out_pad
        w_t = jnp.zeros((in_pad, out_pad), weight_dtype)
        w_t = w_t.at[:in_dim, :out_dim].set(w.T.astype(weight_dtype))
        b_p = jnp.zeros((1, out_pad), jnp.float32).at[0, :out_dim].set(
            b.astype(jnp.float32))
        prepared.append((w_t, b_p))
        prev_out_pad = out_pad
    return prepared


def make_dnn_forward(prepared, dim_out):
    """Returns a jitted forward(x): one fused Pallas kernel, no wrapper pad/slice.

    Note: retraces per distinct (batch, dim_in) shape, as usual under jit.
    """
    flat_params = []
    for w_t, b_p in prepared:
        flat_params.extend([w_t, b_p])
    flat_params = tuple(flat_params)

    @jax.jit
    def forward(x):
        return fused_dnn_call(x, flat_params, dim_out, x.dtype)

    return forward


def dnn_reference(x, params):
    n_layers = len(params)
    for i, (w, b) in enumerate(params):
        x = x @ w.T + b
        if i != n_layers - 1:
            x = jnp.maximum(x, 0.0)
    return x


if __name__ == "__main__":
    dim_in, dim_out, width, depth = 16, 4, 32, 3
    batch = 8

    key = jax.random.PRNGKey(0)
    key, kx = jax.random.split(key)
    x = jax.random.normal(kx, (batch, dim_in), jnp.float32)

    params = init_dnn_params(key, dim_in, dim_out, width, depth)
    prepared = prepare_params(params, dim_in)          # bf16 weights, f32 biases
    forward = make_dnn_forward(prepared, dim_out)

    out = jax.block_until_ready(forward(x))

    ref = dnn_reference(x, params)                     # f32 reference
    assert out.shape == (batch, dim_out), out.shape
    # bf16 weights/activation operands (f32 accumulation): loosened tolerance
    # vs the pure-f32 reference.
    assert jnp.allclose(out, ref, atol=2e-2, rtol=2e-2), "mismatch vs reference"

    print("KERNEL_OK")
</pallas_src>

<mosaic_0001>
module attributes {stable_mosaic.version = 11 : i64} {
  func.func @_fused_dnn_kernel(%arg0: memref<8x16xf32, #tpu.memory_space<vmem>>, %arg1: memref<16x128xbf16, #tpu.memory_space<vmem>>, %arg2: memref<1x128xf32, #tpu.memory_space<vmem>>, %arg3: memref<128x128xbf16, #tpu.memory_space<vmem>>, %arg4: memref<1x128xf32, #tpu.memory_space<vmem>>, %arg5: memref<128x128xbf16, #tpu.memory_space<vmem>>, %arg6: memref<1x128xf32, #tpu.memory_space<vmem>>, %arg7: memref<128x128xbf16, #tpu.memory_space<vmem>>, %arg8: memref<1x128xf32, #tpu.memory_space<vmem>>, %arg9: memref<8x4xf32, #tpu.memory_space<vmem>>) attributes {dimension_semantics = [], scalar_prefetch = 0 : i64, scratch_operands = 0 : i64, tpu.core_type = #tpu.core_type<tc>} {
    %c0 = arith.constant 0 : index
    %c0_0 = arith.constant 0 : index
    %0 = vector.load %arg0[%c0, %c0_0] : memref<8x16xf32, #tpu.memory_space<vmem>>, vector<8x16xf32>
    %1 = arith.truncf %0 : vector<8x16xf32> to vector<8x16xbf16>
    %c0_1 = arith.constant 0 : index
    %c0_2 = arith.constant 0 : index
    %2 = vector.load %arg1[%c0_1, %c0_2] : memref<16x128xbf16, #tpu.memory_space<vmem>>, vector<16x128xbf16>
    %cst = arith.constant dense<0.000000e+00> : vector<8x128xf32>
    %3 = tpu.matmul %1, %2, %cst {dimension_numbers = #tpu.dot_dimension_numbers<[1], [0], [0], [1], [0, 0, 1, 1], [], []>} : vector<8x16xbf16>, vector<16x128xbf16>, vector<8x128xf32> -> vector<8x128xf32>
    %c0_3 = arith.constant 0 : index
    %c0_4 = arith.constant 0 : index
    %4 = vector.load %arg2[%c0_3, %c0_4] : memref<1x128xf32, #tpu.memory_space<vmem>>, vector<1x128xf32>
    %5 = vector.broadcast %4 : vector<1x128xf32> to vector<8x128xf32>
    %6 = arith.addf %3, %5 : vector<8x128xf32>
    %cst_5 = arith.constant 0.000000e+00 : f32
    %7 = vector.broadcast %cst_5 : f32 to vector<8x128xf32>
    %8 = arith.maximumf %6, %7 : vector<8x128xf32>
    %9 = arith.truncf %8 : vector<8x128xf32> to vector<8x128xbf16>
    %c0_6 = arith.constant 0 : index
    %c0_7 = arith.constant 0 : index
    %10 = vector.load %arg3[%c0_6, %c0_7] : memref<128x128xbf16, #tpu.memory_space<vmem>>, vector<128x128xbf16>
    %cst_8 = arith.constant dense<0.000000e+00> : vector<8x128xf32>
    %11 = tpu.matmul %9, %10, %cst_8 {dimension_numbers = #tpu.dot_dimension_numbers<[1], [0], [0], [1], [0, 0, 1, 1], [], []>} : vector<8x128xbf16>, vector<128x128xbf16>, vector<8x128xf32> -> vector<8x128xf32>
    %c0_9 = arith.constant 0 : index
    %c0_10 = arith.constant 0 : index
    %12 = vector.load %arg4[%c0_9, %c0_10] : memref<1x128xf32, #tpu.memory_space<vmem>>, vector<1x128xf32>
    %13 = vector.broadcast %12 : vector<1x128xf32> to vector<8x128xf32>
    %14 = arith.addf %11, %13 : vector<8x128xf32>
    %cst_11 = arith.constant 0.000000e+00 : f32
    %15 = vector.broadcast %cst_11 : f32 to vector<8x128xf32>
    %16 = arith.maximumf %14, %15 : vector<8x128xf32>
    %17 = arith.truncf %16 : vector<8x128xf32> to vector<8x128xbf16>
    %c0_12 = arith.constant 0 : index
    %c0_13 = arith.constant 0 : index
    %18 = vector.load %arg5[%c0_12, %c0_13] : memref<128x128xbf16, #tpu.memory_space<vmem>>, vector<128x128xbf16>
    %cst_14 = arith.constant dense<0.000000e+00> : vector<8x128xf32>
    %19 = tpu.matmul %17, %18, %cst_14 {dimension_numbers = #tpu.dot_dimension_numbers<[1], [0], [0], [1], [0, 0, 1, 1], [], []>} : vector<8x128xbf16>, vector<128x128xbf16>, vector<8x128xf32> -> vector<8x128xf32>
    %c0_15 = arith.constant 0 : index
    %c0_16 = arith.constant 0 : index
    %20 = vector.load %arg6[%c0_15, %c0_16] : memref<1x128xf32, #tpu.memory_space<vmem>>, vector<1x128xf32>
    %21 = vector.broadcast %20 : vector<1x128xf32> to vector<8x128xf32>
    %22 = arith.addf %19, %21 : vector<8x128xf32>
    %cst_17 = arith.constant 0.000000e+00 : f32
    %23 = vector.broadcast %cst_17 : f32 to vector<8x128xf32>
    %24 = arith.maximumf %22, %23 : vector<8x128xf32>
    %25 = arith.truncf %24 : vector<8x128xf32> to vector<8x128xbf16>
    %c0_18 = arith.constant 0 : index
    %c0_19 = arith.constant 0 : index
    %26 = vector.load %arg7[%c0_18, %c0_19] : memref<128x128xbf16, #tpu.memory_space<vmem>>, vector<128x128xbf16>
    %cst_20 = arith.constant dense<0.000000e+00> : vector<8x128xf32>
    %27 = tpu.matmul %25, %26, %cst_20 {dimension_numbers = #tpu.dot_dimension_numbers<[1], [0], [0], [1], [0, 0, 1, 1], [], []>} : vector<8x128xbf16>, vector<128x128xbf16>, vector<8x128xf32> -> vector<8x128xf32>
    %c0_21 = arith.constant 0 : index
    %c0_22 = arith.constant 0 : index
    %28 = vector.load %arg8[%c0_21, %c0_22] : memref<1x128xf32, #tpu.memory_space<vmem>>, vector<1x128xf32>
    %29 = vector.broadcast %28 : vector<1x128xf32> to vector<8x128xf32>
    %30 = arith.addf %27, %29 : vector<8x128xf32>
    %31 = vector.extract_strided_slice %30 {offsets = [0, 0], sizes = [8, 4], strides = [1, 1]} : vector<8x128xf32> to vector<8x4xf32>
    %c0_23 = arith.constant 0 : index
    %c0_24 = arith.constant 0 : index
    %32 = vector.load %arg9[%c0_23, %c0_24] : memref<8x4xf32, #tpu.memory_space<vmem>>, vector<8x4xf32>
    tpu.vector_store %arg9[%c0_23, %c0_24], %31 {strides = array<i32>} : memref<8x4xf32, #tpu.memory_space<vmem>>, vector<8x4xf32>,
    return
  }
}

</mosaic_0001>

<llo_original>
// kernel: forward.1
$region0: #{forward.1}
  #allocation0 [shape = 'u32[]', space=smem, size = 0x4, offset = 0x4, fixed_abs, tag = 'smem constant byte address 0x4 - core index']
  #allocation1 [shape = 'u32[144,128]{1,0:T(1,128)}', space=vmem, size = 0x12000, scoped, tag = 'internal scratch']
  %s0 = inlined_call_operand.vmem [shape: f32[8,16], index: 0, kind: input, shape index: {}]
  %s1 = inlined_call_operand.vmem [shape: bf16[16,128], index: 1, kind: input, shape index: {}]
  %s2 = inlined_call_operand.hbm [shape: f32[1,128], index: 2, kind: input, shape index: {}]
  %s3 = inlined_call_operand.hbm [shape: bf16[128,128], index: 3, kind: input, shape index: {}]
  %s4 = inlined_call_operand.vmem [shape: f32[1,128], index: 4, kind: input, shape index: {}]
  %s5 = inlined_call_operand.hbm [shape: bf16[128,128], index: 5, kind: input, shape index: {}]
  %s6 = inlined_call_operand.vmem [shape: f32[1,128], index: 6, kind: input, shape index: {}]
  %s7 = inlined_call_operand.hbm [shape: bf16[128,128], index: 7, kind: input, shape index: {}]
  %s8 = inlined_call_operand.vmem [shape: f32[1,128], index: 8, kind: input, shape index: {}]
  %s9 = inlined_call_operand.vmem [shape: f32[8,4], index: 9, kind: output, shape index: {}]
  %s10 = sld [smem:[#allocation0]]
  $region62: #{forward.1} parent=0
    _
  %s12 = ssub.s32 1, %s10
  %s13 = scalar_select 0, %s12, %s10
  $region1: #{forward.1} parent=0
    #allocation2 [shape = 'u8[512]{0}', space=vmem, size = 0x400, scoped, tag = 'input window, operand 2, single buffered']
    #allocation3 [shape = 's32[1]{0}', space=sflag, size = 0x4, scoped, tag = 'scoped memory for forward.1']
    #allocation4 [shape = 'u8[32768]{0}', space=vmem, size = 0x8000, scoped, tag = 'input window, operand 3, single buffered']
    #allocation5 [shape = 's32[1]{0}', space=sflag, size = 0x4, scoped, tag = 'scoped memory for forward.1']
    #allocation6 [shape = 'u8[32768]{0}', space=vmem, size = 0x8000, scoped, tag = 'input window, operand 5, single buffered']
    #allocation7 [shape = 'u8[32768]{0}', space=vmem, size = 0x8000, scoped, tag = 'input window, operand 7, single buffered']
    #allocation8 [shape = 's32[1]{0}', space=sflag, size = 0x4, scoped, tag = 'scoped memory for forward.1']
    %14 = vsyncpa [#allocation3], 0
    %15 = vsyncpa [#allocation5], 0
    %16 = vsyncpa [#allocation8], 0
    // Predicated region
    $region2: #{forward.1} parent=1 // pred_check
      _
    $region3: #{forward.1} parent=1 // pred_check_branch
      %18 = sbr.rel (0) target = $region5
    $region4: #{forward.1} parent=1 // pred_region
      _
    $region5: #{forward.1} parent=1 // pred_fallthru
      _
    // Predicated region
    $region6: #{forward.1} parent=1 // pred_check
      _
    $region7: #{forward.1} parent=1 // pred_check_branch
      %20 = sbr.rel (0) target = $region9
    $region8: #{forward.1} parent=1 // pred_region
      _
    $region9: #{forward.1} parent=1 // pred_fallthru
      _
    // Predicated region
    $region10: #{forward.1} parent=1 // pred_check
      _
    $region11: #{forward.1} parent=1 // pred_check_branch
      %22 = sbr.rel (0) target = $region13
    $region12: #{forward.1} parent=1 // pred_region
      %s24 = ssub.s32 16, 16
      %25 = vsyncadd [#allocation3], %s24
      %s27 = sshll.u32 [#allocation2], 4
      %s28 = int_to_ptr.vmem [resolvable:$true] %s27
      %30 = dma.hbm_to_vmem [thread:$0]  %s2, 16, %s28, [#allocation3]
    $region13: #{forward.1} parent=1 // pred_fallthru
      _
    // Predicated region
    $region14: #{forward.1} parent=1 // pred_check
      _
    $region15: #{forward.1} parent=1 // pred_check_branch
      %32 = sbr.rel (0) target = $region17
    $region16: #{forward.1} parent=1 // pred_region
      %s34 = ssub.s32 1024, 1024
      %35 = vsyncadd [#allocation5], %s34
      %s36 = sshll.u32 [#allocation4], 4
      %s37 = int_to_ptr.vmem [resolvable:$true] %s36
      %42 = dma.hbm_to_vmem [thread:$0]  %s3, 1024, %s37, [#allocation5], 64, 64, 4
    $region17: #{forward.1} parent=1 // pred_fallthru
      _
    // Predicated region
    $region18: #{forward.1} parent=1 // pred_check
      _
    $region19: #{forward.1} parent=1 // pred_check_branch
      %44 = sbr.rel (0) target = $region21
    $region20: #{forward.1} parent=1 // pred_region
      _
    $region21: #{forward.1} parent=1 // pred_fallthru
      _
    // Predicated region
    $region22: #{forward.1} parent=1 // pred_check
      _
    $region23: #{forward.1} parent=1 // pred_check_branch
      %46 = sbr.rel (0) target = $region25
    $region24: #{forward.1} parent=1 // pred_region
      %s48 = ssub.s32 1024, 1024
      %49 = vsyncadd [#allocation5], %s48
      %s50 = sshll.u32 [#allocation6], 4
      %s51 = int_to_ptr.vmem [resolvable:$true] %s50
      %56 = dma.hbm_to_vmem [thread:$0]  %s5, 1024, %s51, [#allocation5], 64, 64, 4
    $region25: #{forward.1} parent=1 // pred_fallthru
      _
    // Predicated region
    $region26: #{forward.1} parent=1 // pred_check
      _
    $region27: #{forward.1} parent=1 // pred_check_branch
      %58 = sbr.rel (0) target = $region29
    $region28: #{forward.1} parent=1 // pred_region
      _
    $region29: #{forward.1} parent=1 // pred_fallthru
      _
    // Predicated region
    $region30: #{forward.1} parent=1 // pred_check
      _
    $region31: #{forward.1} parent=1 // pred_check_branch
      %60 = sbr.rel (0) target = $region33
    $region32: #{forward.1} parent=1 // pred_region
      %s62 = ssub.s32 1024, 1024
      %63 = vsyncadd [#allocation8], %s62
      %s64 = sshll.u32 [#allocation7], 4
      %s65 = int_to_ptr.vmem [resolvable:$true] %s64
      %70 = dma.hbm_to_vmem [thread:$0]  %s7, 1024, %s65, [#allocation8], 64, 64, 4
    $region33: #{forward.1} parent=1 // pred_fallthru
      _
    // Predicated region
    $region34: #{forward.1} parent=1 // pred_check
      _
    $region35: #{forward.1} parent=1 // pred_check_branch
      %72 = sbr.rel (0) target = $region37
    $region36: #{forward.1} parent=1 // pred_region
      _
    $region37: #{forward.1} parent=1 // pred_fallthru
      _
    // Predicated region
    $region38: #{forward.1} parent=1 // pred_check
      _
    $region39: #{forward.1} parent=1 // pred_check_branch
      %74 = sbr.rel (0) target = $region41
    $region40: #{forward.1} parent=1 // pred_region
      %75 = dma.done [#allocation3], 16
    $region41: #{forward.1} parent=1 // pred_fallthru
      _
    // Predicated region
    $region42: #{forward.1} parent=1 // pred_check
      _
    $region43: #{forward.1} parent=1 // pred_check_branch
      %77 = sbr.rel (0) target = $region45
    $region44: #{forward.1} parent=1 // pred_region
      %78 = dma.done [#allocation5], 1024
    $region45: #{forward.1} parent=1 // pred_fallthru
      _
    // Predicated region
    $region46: #{forward.1} parent=1 // pred_check
      _
    $region47: #{forward.1} parent=1 // pred_check_branch
      %80 = sbr.rel (0) target = $region49
    $region48: #{forward.1} parent=1 // pred_region
      %81 = dma.done [#allocation5], 1024
    $region49: #{forward.1} parent=1 // pred_fallthru
      _
    // Predicated region
    $region50: #{forward.1} parent=1 // pred_check
      _
    $region51: #{forward.1} parent=1 // pred_check_branch
      %83 = sbr.rel (0) target = $region53
    $region52: #{forward.1} parent=1 // pred_region
      %84 = dma.done [#allocation8], 1024
    $region53: #{forward.1} parent=1 // pred_fallthru
      _
    %v86 = vld [vmem:[%s0] sm:$0xff]
    %v87 = vpack.c.bf16 %v86, %v86
    %v88 = vld [vmem:[%s1] sm:$0xf]
    %v89 = vld [vmem:[%s1 + $0x4] sm:$0xf]
    %v90 = vld [vmem:[#allocation2] sm:$0x1]
    %v92 = vlaneseq
    %v93 = vshrl.u32 %v92, 7
    %v94 = vsub.s32 0, %v93
    %v95 = vrot.slane %v90, %v94
    %v99 = vunpack.c.l.b16 %v88
    %v100 = vunpack.c.l.b16 %v89
    %v101 = vpack.c.b16 %v100, %v99
    %vm103 = vcmask 130048
    %v105 = vsel %vm103, %v87, 0
    %107 = vmatprep.subr.bf16.mxu0 0
    %108 = vmatpush1.bf16.msra.mxu0 %v101
    %109 = vmatprep.subr.bf16.mxu0 0
    %110 = vmatpush1.bf16.msra.mxu0 0
    %111 = vmatprep.subr.bf16.mxu0 0
    %112 = vmatpush1.bf16.msra.mxu0 0
    %113 = vmatprep.subr.bf16.mxu0 0
    %114 = vmatpush1.bf16.msra.mxu0 0
    %115 = vmatprep.subr.bf16.mxu0 0
    %116 = vmatpush1.bf16.msra.mxu0 0
    %117 = vmatprep.subr.bf16.mxu0 0
    %118 = vmatpush1.bf16.msra.mxu0 0
    %119 = vmatprep.subr.bf16.mxu0 0
    %120 = vmatpush1.bf16.msra.mxu0 0
    %121 = vmatprep.subr.bf16.mxu0 0
    %122 = vmatpush1.bf16.msra.mxu0 0
    %123 = vmatprep.subr.bf16.mxu0 0
    %124 = vmatpush1.bf16.msra.mxu0 0
    %125 = vmatprep.subr.bf16.mxu0 0
    %126 = vmatpush1.bf16.msra.mxu0 0
    %127 = vmatprep.subr.bf16.mxu0 0
    %128 = vmatpush1.bf16.msra.mxu0 0
    %129 = vmatprep.subr.bf16.mxu0 0
    %130 = vmatpush1.bf16.msra.mxu0 0
    %131 = vmatprep.subr.bf16.mxu0 0
    %132 = vmatpush1.bf16.msra.mxu0 0
    %133 = vmatprep.subr.bf16.mxu0 0
    %134 = vmatpush1.bf16.msra.mxu0 0
    %135 = vmatprep.subr.bf16.mxu0 0
    %136 = vmatpush1.bf16.msra.mxu0 0
    %137 = vmatprep.subr.bf16.mxu0 0
    %138 = vmatpush1.bf16.msra.mxu0 0
    %139 = vmatprep.mubr.bf16.mxu0 0
    %140 = vmatmul.mubr.bf16.gmra.mrb[0].mxu0 %v105
    %v141 = vpop.f32.mrb[0].mxu0
    %v142 = vadd.f32 %v95, %v141
    %v143 = vpop.f32.mrb[0].mxu0
    %v144 = vpop.f32.mrb[0].mxu0
    %v145 = vpop.f32.mrb[0].mxu0
    %146 = vdwg.mxu0
    %v147 = vmax.f32 %v142, 0.0
    %v148 = vpack.c.bf16 %v147, %v147
    %v149 = vld [vmem:[#allocation4] sm:$0xf]
    %v150 = vld [vmem:[#allocation4 + $0x4] sm:$0xf]
    %v151 = vld [vmem:[#allocation4 + $0x8] sm:$0xf]
    %v152 = vld [vmem:[#allocation4 + $0xc] sm:$0xf]
    %v153 = vld [vmem:[#allocation4 + $0x10] sm:$0xf]
    %v154 = vld [vmem:[#allocation4 + $0x14] sm:$0xf]
    %v155 = vld [vmem:[#allocation4 + $0x18] sm:$0xf]
    %v156 = vld [vmem:[#allocation4 + $0x1c] sm:$0xf]
    %v157 = vld [vmem:[#allocation4 + $0x20] sm:$0xf]
    %v158 = vld [vmem:[#allocation4 + $0x24] sm:$0xf]
    %v159 = vld [vmem:[#allocation4 + $0x28] sm:$0xf]
    %v160 = vld [vmem:[#allocation4 + $0x2c] sm:$0xf]
    %v161 = vld [vmem:[#allocation4 + $0x30] sm:$0xf]
    %v162 = vld [vmem:[#allocation4 + $0x34] sm:$0xf]
    %v163 = vld [vmem:[#allocation4 + $0x38] sm:$0xf]
    %v164 = vld [vmem:[#allocation4 + $0x3c] sm:$0xf]
    %v165 = vld [vmem:[%s4] sm:$0x1]
    %v167 = vlaneseq
    %v168 = vshrl.u32 %v167, 7
    %v169 = vsub.s32 0, %v168
    %v170 = vrot.slane %v165, %v169
    %v188 = vunpack.c.l.b16 %v149
    %v189 = vunpack.c.l.b16 %v150
    %v190 = vunpack.c.l.b16 %v151
    %v191 = vunpack.c.l.b16 %v152
    %v192 = vunpack.c.l.b16 %v153
    %v193 = vunpack.c.l.b16 %v154
    %v194 = vunpack.c.l.b16 %v155
    %v195 = vunpack.c.l.b16 %v156
    %v196 = vunpack.c.l.b16 %v157
    %v197 = vunpack.c.l.b16 %v158
    %v198 = vunpack.c.l.b16 %v159
    %v199 = vunpack.c.l.b16 %v160
    %v200 = vunpack.c.l.b16 %v161
    %v201 = vunpack.c.l.b16 %v162
    %v202 = vunpack.c.l.b16 %v163
    %v203 = vunpack.c.l.b16 %v164
    %v204 = vpack.c.b16 %v189, %v188
    %v205 = vpack.c.b16 %v191, %v190
    %v206 = vpack.c.b16 %v193, %v192
    %v207 = vpack.c.b16 %v195, %v194
    %v208 = vpack.c.b16 %v197, %v196
    %v209 = vpack.c.b16 %v199, %v198
    %v210 = vpack.c.b16 %v201, %v200
    %v211 = vpack.c.b16 %v203, %v202
    %220 = vmatprep.subr.bf16.mxu0 0
    %221 = vmatpush1.bf16.msra.mxu0 %v204
    %222 = vmatprep.subr.bf16.mxu0 0
    %223 = vmatpush1.bf16.msra.mxu0 %v205
    %224 = vmatprep.subr.bf16.mxu0 0
    %225 = vmatpush1.bf16.msra.mxu0 %v206
    %226 = vmatprep.subr.bf16.mxu0 0
    %227 = vmatpush1.bf16.msra.mxu0 %v207
    %228 = vmatprep.subr.bf16.mxu0 0
    %229 = vmatpush1.bf16.msra.mxu0 %v208
    %230 = vmatprep.subr.bf16.mxu0 0
    %231 = vmatpush1.bf16.msra.mxu0 %v209
    %232 = vmatprep.subr.bf16.mxu0 0
    %233 = vmatpush1.bf16.msra.mxu0 %v210
    %234 = vmatprep.subr.bf16.mxu0 0
    %235 = vmatpush1.bf16.msra.mxu0 %v211
    %236 = vmatprep.subr.bf16.mxu0 0
    %237 = vmatpush1.bf16.msra.mxu0 0
    %238 = vmatprep.subr.bf16.mxu0 0
    %239 = vmatpush1.bf16.msra.mxu0 0
    %240 = vmatprep.subr.bf16.mxu0 0
    %241 = vmatpush1.bf16.msra.mxu0 0
    %242 = vmatprep.subr.bf16.mxu0 0
    %243 = vmatpush1.bf16.msra.mxu0 0
    %244 = vmatprep.subr.bf16.mxu0 0
    %245 = vmatpush1.bf16.msra.mxu0 0
    %246 = vmatprep.subr.bf16.mxu0 0
    %247 = vmatpush1.bf16.msra.mxu0 0
    %248 = vmatprep.subr.bf16.mxu0 0
    %249 = vmatpush1.bf16.msra.mxu0 0
    %250 = vmatprep.subr.bf16.mxu0 0
    %251 = vmatpush1.bf16.msra.mxu0 0
    %252 = vmatprep.mubr.bf16.mxu0 0
    %253 = vmatmul.mubr.bf16.gmra.mrb[0].mxu0 %v148
    %v254 = vpop.f32.mrb[0].mxu0
    %v255 = vadd.f32 %v170, %v254
    %v256 = vpop.f32.mrb[0].mxu0
    %v257 = vpop.f32.mrb[0].mxu0
    %v258 = vpop.f32.mrb[0].mxu0
    %259 = vdwg.mxu0
    %v260 = vmax.f32 %v255, 0.0
    %v261 = vpack.c.bf16 %v260, %v260
    %v262 = vld [vmem:[#allocation6] sm:$0xf]
    %v263 = vld [vmem:[#allocation6 + $0x4] sm:$0xf]
    %v264 = vld [vmem:[#allocation6 + $0x8] sm:$0xf]
    %v265 = vld [vmem:[#allocation6 + $0xc] sm:$0xf]
    %v266 = vld [vmem:[#allocation6 + $0x10] sm:$0xf]
    %v267 = vld [vmem:[#allocation6 + $0x14] sm:$0xf]
    %v268 = vld [vmem:[#allocation6 + $0x18] sm:$0xf]
    %v269 = vld [vmem:[#allocation6 + $0x1c] sm:$0xf]
    %v270 = vld [vmem:[#allocation6 + $0x20] sm:$0xf]
    %v271 = vld [vmem:[#allocation6 + $0x24] sm:$0xf]
    %v272 = vld [vmem:[#allocation6 + $0x28] sm:$0xf]
    %v273 = vld [vmem:[#allocation6 + $0x2c] sm:$0xf]
    %v274 = vld [vmem:[#allocation6 + $0x30] sm:$0xf]
    %v275 = vld [vmem:[#allocation6 + $0x34] sm:$0xf]
    %v276 = vld [vmem:[#allocation6 + $0x38] sm:$0xf]
    %v277 = vld [vmem:[#allocation6 + $0x3c] sm:$0xf]
    %v278 = vld [vmem:[%s6] sm:$0x1]
    %v280 = vlaneseq
    %v281 = vshrl.u32 %v280, 7
    %v282 = vsub.s32 0, %v281
    %v283 = vrot.slane %v278, %v282
    %v301 = vunpack.c.l.b16 %v262
    %v302 = vunpack.c.l.b16 %v263
    %v303 = vunpack.c.l.b16 %v264
    %v304 = vunpack.c.l.b16 %v265
    %v305 = vunpack.c.l.b16 %v266
    %v306 = vunpack.c.l.b16 %v267
    %v307 = vunpack.c.l.b16 %v268
    %v308 = vunpack.c.l.b16 %v269
    %v309 = vunpack.c.l.b16 %v270
    %v310 = vunpack.c.l.b16 %v271
    %v311 = vunpack.c.l.b16 %v272
    %v312 = vunpack.c.l.b16 %v273
    %v313 = vunpack.c.l.b16 %v274
    %v314 = vunpack.c.l.b16 %v275
    %v315 = vunpack.c.l.b16 %v276
    %v316 = vunpack.c.l.b16 %v277
    %v317 = vpack.c.b16 %v302, %v301
    %v318 = vpack.c.b16 %v304, %v303
    %v319 = vpack.c.b16 %v306, %v305
    %v320 = vpack.c.b16 %v308, %v307
    %v321 = vpack.c.b16 %v310, %v309
    %v322 = vpack.c.b16 %v312, %v311
    %v323 = vpack.c.b16 %v314, %v313
    %v324 = vpack.c.b16 %v316, %v315
    %333 = vmatprep.subr.bf16.mxu0 0
    %334 = vmatpush1.bf16.msra.mxu0 %v317
    %335 = vmatprep.subr.bf16.mxu0 0
    %336 = vmatpush1.bf16.msra.mxu0 %v318
    %337 = vmatprep.subr.bf16.mxu0 0
    %338 = vmatpush1.bf16.msra.mxu0 %v319
    %339 = vmatprep.subr.bf16.mxu0 0
    %340 = vmatpush1.bf16.msra.mxu0 %v320
    %341 = vmatprep.subr.bf16.mxu0 0
    %342 = vmatpush1.bf16.msra.mxu0 %v321
    %343 = vmatprep.subr.bf16.mxu0 0
    %344 = vmatpush1.bf16.msra.mxu0 %v322
    %345 = vmatprep.subr.bf16.mxu0 0
    %346 = vmatpush1.bf16.msra.mxu0 %v323
    %347 = vmatprep.subr.bf16.mxu0 0
    %348 = vmatpush1.bf16.msra.mxu0 %v324
    %349 = vmatprep.subr.bf16.mxu0 0
    %350 = vmatpush1.bf16.msra.mxu0 0
    %351 = vmatprep.subr.bf16.mxu0 0
    %352 = vmatpush1.bf16.msra.mxu0 0
    %353 = vmatprep.subr.bf16.mxu0 0
    %354 = vmatpush1.bf16.msra.mxu0 0
    %355 = vmatprep.subr.bf16.mxu0 0
    %356 = vmatpush1.bf16.msra.mxu0 0
    %357 = vmatprep.subr.bf16.mxu0 0
    %358 = vmatpush1.bf16.msra.mxu0 0
    %359 = vmatprep.subr.bf16.mxu0 0
    %360 = vmatpush1.bf16.msra.mxu0 0
    %361 = vmatprep.subr.bf16.mxu0 0
    %362 = vmatpush1.bf16.msra.mxu0 0
    %363 = vmatprep.subr.bf16.mxu0 0
    %364 = vmatpush1.bf16.msra.mxu0 0
    %365 = vmatprep.mubr.bf16.mxu0 0
    %366 = vmatmul.mubr.bf16.gmra.mrb[0].mxu0 %v261
    %v367 = vpop.f32.mrb[0].mxu0
    %v368 = vadd.f32 %v283, %v367
    %v369 = vpop.f32.mrb[0].mxu0
    %v370 = vpop.f32.mrb[0].mxu0
    %v371 = vpop.f32.mrb[0].mxu0
    %372 = vdwg.mxu0
    %v373 = vmax.f32 %v368, 0.0
    %v374 = vpack.c.bf16 %v373, %v373
    %v375 = vld [vmem:[#allocation7] sm:$0xf]
    %v376 = vld [vmem:[#allocation7 + $0x4] sm:$0xf]
    %v377 = vld [vmem:[#allocation7 + $0x8] sm:$0xf]
    %v378 = vld [vmem:[#allocation7 + $0xc] sm:$0xf]
    %v379 = vld [vmem:[#allocation7 + $0x10] sm:$0xf]
    %v380 = vld [vmem:[#allocation7 + $0x14] sm:$0xf]
    %v381 = vld [vmem:[#allocation7 + $0x18] sm:$0xf]
    %v382 = vld [vmem:[#allocation7 + $0x1c] sm:$0xf]
    %v383 = vld [vmem:[#allocation7 + $0x20] sm:$0xf]
    %v384 = vld [vmem:[#allocation7 + $0x24] sm:$0xf]
    %v385 = vld [vmem:[#allocation7 + $0x28] sm:$0xf]
    %v386 = vld [vmem:[#allocation7 + $0x2c] sm:$0xf]
    %v387 = vld [vmem:[#allocation7 + $0x30] sm:$0xf]
    %v388 = vld [vmem:[#allocation7 + $0x34] sm:$0xf]
    %v389 = vld [vmem:[#allocation7 + $0x38] sm:$0xf]
    %v390 = vld [vmem:[#allocation7 + $0x3c] sm:$0xf]
    %v391 = vld [vmem:[%s8] sm:$0x1]
    %v393 = vlaneseq
    %v394 = vshrl.u32 %v393, 7
    %v395 = vsub.s32 0, %v394
    %v396 = vrot.slane %v391, %v395
    %v414 = vunpack.c.l.b16 %v375
    %v415 = vunpack.c.l.b16 %v376
    %v416 = vunpack.c.l.b16 %v377
    %v417 = vunpack.c.l.b16 %v378
    %v418 = vunpack.c.l.b16 %v379
    %v419 = vunpack.c.l.b16 %v380
    %v420 = vunpack.c.l.b16 %v381
    %v421 = vunpack.c.l.b16 %v382
    %v422 = vunpack.c.l.b16 %v383
    %v423 = vunpack.c.l.b16 %v384
    %v424 = vunpack.c.l.b16 %v385
    %v425 = vunpack.c.l.b16 %v386
    %v426 = vunpack.c.l.b16 %v387
    %v427 = vunpack.c.l.b16 %v388
    %v428 = vunpack.c.l.b16 %v389
    %v429 = vunpack.c.l.b16 %v390
    %v430 = vpack.c.b16 %v415, %v414
    %v431 = vpack.c.b16 %v417, %v416
    %v432 = vpack.c.b16 %v419, %v418
    %v433 = vpack.c.b16 %v421, %v420
    %v434 = vpack.c.b16 %v423, %v422
    %v435 = vpack.c.b16 %v425, %v424
    %v436 = vpack.c.b16 %v427, %v426
    %v437 = vpack.c.b16 %v429, %v428
    %446 = vmatprep.subr.bf16.mxu0 0
    %447 = vmatpush1.bf16.msra.mxu0 %v430
    %448 = vmatprep.subr.bf16.mxu0 0
    %449 = vmatpush1.bf16.msra.mxu0 %v431
    %450 = vmatprep.subr.bf16.mxu0 0
    %451 = vmatpush1.bf16.msra.mxu0 %v432
    %452 = vmatprep.subr.bf16.mxu0 0
    %453 = vmatpush1.bf16.msra.mxu0 %v433
    %454 = vmatprep.subr.bf16.mxu0 0
    %455 = vmatpush1.bf16.msra.mxu0 %v434
    %456 = vmatprep.subr.bf16.mxu0 0
    %457 = vmatpush1.bf16.msra.mxu0 %v435
    %458 = vmatprep.subr.bf16.mxu0 0
    %459 = vmatpush1.bf16.msra.mxu0 %v436
    %460 = vmatprep.subr.bf16.mxu0 0
    %461 = vmatpush1.bf16.msra.mxu0 %v437
    %462 = vmatprep.subr.bf16.mxu0 0
    %463 = vmatpush1.bf16.msra.mxu0 0
    %464 = vmatprep.subr.bf16.mxu0 0
    %465 = vmatpush1.bf16.msra.mxu0 0
    %466 = vmatprep.subr.bf16.mxu0 0
    %467 = vmatpush1.bf16.msra.mxu0 0
    %468 = vmatprep.subr.bf16.mxu0 0
    %469 = vmatpush1.bf16.msra.mxu0 0
    %470 = vmatprep.subr.bf16.mxu0 0
    %471 = vmatpush1.bf16.msra.mxu0 0
    %472 = vmatprep.subr.bf16.mxu0 0
    %473 = vmatpush1.bf16.msra.mxu0 0
    %474 = vmatprep.subr.bf16.mxu0 0
    %475 = vmatpush1.bf16.msra.mxu0 0
    %476 = vmatprep.subr.bf16.mxu0 0
    %477 = vmatpush1.bf16.msra.mxu0 0
    %478 = vmatprep.mubr.bf16.mxu0 0
    %479 = vmatmul.mubr.bf16.gmra.mrb[0].mxu0 %v374
    %v480 = vpop.f32.mrb[0].mxu0
    %v481 = vadd.f32 %v396, %v480
    %v482 = vpop.f32.mrb[0].mxu0
    %v483 = vpop.f32.mrb[0].mxu0
    %v484 = vpop.f32.mrb[0].mxu0
    %485 = vdwg.mxu0
    %vm486 = vcmask 31744
    %487 = vst.msk [vmem:[%s9] sm:$0xff] %vm486, %v481
    // Predicated region
    $region54: #{forward.1} parent=1 // pred_check
      _
    $region55: #{forward.1} parent=1 // pred_check_branch
      %489 = sbr.rel (0) target = $region57
    $region56: #{forward.1} parent=1 // pred_region
      _
    $region57: #{forward.1} parent=1 // pred_fallthru
      _
    // Predicated region
    $region58: #{forward.1} parent=1 // pred_check
      _
    $region59: #{forward.1} parent=1 // pred_check_branch
      %491 = sbr.rel (0) target = $region61
    $region60: #{forward.1} parent=1 // pred_region
      _
    $region61: #{forward.1} parent=1 // pred_fallthru
      _
    %492 = vsyncpa [#allocation3], 1
    %493 = vsyncpa [#allocation5], 1
    %494 = vsyncpa [#allocation8], 1

</llo_original>
